<compile_context>
chip_gen: v5e
topology: v5e:2x2
jax: 0.10.0
libtpu: 0.0.40
codegen_flags: <defaults>
</compile_context>

<pallas_src>
import numpy as np
import jax
import jax.numpy as jnp
from jax import lax
from jax.experimental import pallas as pl
from jax.experimental.pallas import tpu as pltpu

LATENT_DIMS = 4  # linear_mean / linear_sig / linear_enc are never used in forward()

ARRANGE = np.array([28, 29, 30, 31, 0, 4, 8, 12, 24, 25, 26, 27, 1, 5, 9, 13,
                    20, 21, 22, 23, 2, 6, 10, 14, 16, 17, 18, 19, 3, 7, 11, 15,
                    47, 43, 39, 35, 35, 34, 33, 32, 46, 42, 38, 34, 39, 38, 37,
                    36, 45, 41, 37, 33, 43, 42, 41, 40, 44, 40, 36, 32, 47, 46,
                    45, 44])
ARRMASK = np.array([1, 1, 1, 1, 1, 1, 1, 1, 1, 1, 1, 1, 1, 1, 1, 1,
                    1, 1, 1, 1, 1, 1, 1, 1, 1, 1, 1, 1, 1, 1, 1, 1,
                    1, 1, 1, 1, 0, 0, 0, 0, 1, 1, 1, 1, 0, 0, 0, 0,
                    1, 1, 1, 1, 0, 0, 0, 0, 1, 1, 1, 1, 0, 0, 0, 0])


def _round_up(x, m):
    return ((x + m - 1) // m) * m


# ----------------------------------------------------------------------------
# Parameter setup: fold gather + mask + im2col conv + condition-sum into dense
# matrices, plus the widened encoder weight and the ReLU-bypass floor row.
# ----------------------------------------------------------------------------
def build_folded_params(conv_w, conv_b, enc_w, enc_b):
    """conv_w (8,1,3,3), conv_b (8,), enc_w (16,73), enc_b (16,)."""
    # Permutation + mask: masked gather x[:, arrange] == x @ P, P is (48, 64).
    P = np.zeros((48, 64), np.float32)
    for j in range(64):
        if ARRMASK[j] == 1:
            P[ARRANGE[j], j] = 1.0

    # im2col conv matrix (64 pixels -> 72 = 8 out-channels * 3*3 spatial),
    # column index matches torch.flatten(NCHW): c_out*9 + oh*3 + ow.
    cw = np.asarray(conv_w, np.float32)
    Wf = np.zeros((64, 72), np.float32)
    for co in range(8):
        for oh in range(3):
            for ow in range(3):
                for kh in range(3):
                    for kw in range(3):
                        ih, iw = 2 * oh + kh, 2 * ow + kw
                        Wf[ih * 8 + iw, co * 9 + oh * 3 + ow] += cw[co, 0, kh, kw]

    # Folded first-matmul matrix, shaped for batch-on-lanes results:
    #   rows 0..71  = (gather+mask+conv) weights,
    #   row 72      = all-ones  -> c = sum(x) computed by the same matmul,
    #   rows 73..79 = zero padding to a multiple of 8 sublanes.
    m_aug = np.zeros((80, 48), np.float32)
    m_aug[:72, :] = (P @ Wf).T
    m_aug[72, :] = 1.0

    # Conv bias broadcast over the 3x3 spatial outputs; rows 72..79 get 0.
    bconv80 = np.zeros((80, 1), np.float32)
    bconv80[:72, 0] = np.repeat(np.asarray(conv_b, np.float32), 9)

    # "ReLU floor": max(h + bias, floor) gives ReLU on rows 0..71 and passes
    # row 72 (= c, may be negative) through untouched; rows 73..79 stay 0.
    floor80 = np.zeros((80, 1), np.float32)
    floor80[72, 0] = -np.inf

    # Widened encoder weight (16, 80): cols 0..71 act on relu(conv), col 72
    # acts on c, cols 73..79 are zero (contract against the zero-pad rows).
    enc_w = np.asarray(enc_w, np.float32)                      # (16, 73)
    w_enc80 = np.zeros((16, 80), np.float32)
    w_enc80[:, :73] = enc_w
    b_enc = np.asarray(enc_b, np.float32).reshape(16, 1)       # (16, 1)

    return tuple(jnp.asarray(a) for a in (m_aug, bconv80, floor80, w_enc80, b_enc))


# ----------------------------------------------------------------------------
# Pallas kernel: full forward hot path for one batch tile (batch on lanes).
# ----------------------------------------------------------------------------
def encoder_kernel(x_ref, maug_ref, bconv_ref, floor_ref, wenc_ref, benc_ref,
                   out_ref):
    x = x_ref[...]                                            # (TB, 48) f32
    # One MXU matmul, RHS contracted on its feature dim (no HBM transpose):
    # rows 0..71 = folded gather+mask+conv, row 72 = sum(x) -> c, 73..79 = 0.
    h_all = lax.dot_general(maug_ref[...], x,
                            dimension_numbers=(((1,), (1,)), ((), ())),
                            preferred_element_type=jnp.float32)  # (80, TB)
    # bias + ReLU on conv rows; row 72 (c) bypasses ReLU via the -inf floor.
    h = jnp.maximum(h_all + bconv_ref[...], floor_ref[...])     # (80, TB)
    # Linear(73, 16): the c column and its weight are folded into this matmul.
    enc = (jnp.dot(wenc_ref[...], h, preferred_element_type=jnp.float32)
           + benc_ref[...])                                      # (16, TB)
    # Two direct sublane-sliced stores -> no concatenated temporary.
    out_ref[0:16, :] = jnp.maximum(enc, 0.0)
    out_ref[16:17, :] = h[72:73, :]                              # c


def _choose_tile(B, tb):
    """Batch tile: multiple of 128, capped at tb, >=2 grid steps when possible."""
    TB = min(tb, _round_up(B, 128))
    TB = max(128, _round_up(TB, 128))
    # v7x megacore: keep at least two grid steps so both TensorCores get work.
    if pl.cdiv(B, TB) < 2 and TB > 128:
        TB = max(128, _round_up(pl.cdiv(B, 2), 128))
    return TB


def cae_encoder_forward_lanes(x, folded_params, tb=8192):
    """x: (B, 48) float32 -> (17, B) float32 (batch-on-lanes output)."""
    B = x.shape[0]
    m_aug, bconv80, floor80, w_enc80, b_enc = folded_params
    TB = _choose_tile(B, tb)
    grid = pl.cdiv(B, TB)          # ragged last tile handled by masked writes

    const2 = lambda i: (0, 0)
    return pl.pallas_call(
        encoder_kernel,
        out_shape=jax.ShapeDtypeStruct((17, B), jnp.float32),
        grid_spec=pltpu.PrefetchScalarGridSpec(
            num_scalar_prefetch=0,
            grid=(grid,),
            in_specs=[
                pl.BlockSpec((TB, 48), lambda i: (i, 0)),   # streamed input tile
                pl.BlockSpec((80, 48), const2),             # weights: VMEM-resident
                pl.BlockSpec((80, 1), const2),
                pl.BlockSpec((80, 1), const2),
                pl.BlockSpec((16, 80), const2),
                pl.BlockSpec((16, 1), const2),
            ],
            out_specs=pl.BlockSpec((17, TB), lambda i: (0, i)),
        ),
        compiler_params=pltpu.CompilerParams(
            dimension_semantics=("parallel",),
            vmem_limit_bytes=32 * 1024 * 1024),
    )(x.astype(jnp.float32), m_aug, bconv80, floor80, w_enc80, b_enc)


def cae_encoder_forward(x, folded_params, tb=8192):
    """x: (B, 48) float32 -> (B, 17) float32 (matches the PyTorch module).

    The trailing transpose is pure layout plumbing; performance-sensitive
    consumers should call cae_encoder_forward_lanes and keep (17, B).
    """
    return cae_encoder_forward_lanes(x, folded_params, tb=tb).T


# ----------------------------------------------------------------------------
# Pure-JAX reference (mirrors the PyTorch forward exactly) for validation.
# ----------------------------------------------------------------------------
def reference_forward(x, conv_w, conv_b, enc_w, enc_b):
    c = jnp.sum(x[:, 0:48], axis=1, keepdims=True)
    data = x[:, ARRANGE] * jnp.asarray(ARRMASK == 1, x.dtype)
    img = data.reshape(x.shape[0], 1, 8, 8)
    conv = jax.lax.conv_general_dilated(
        img, conv_w, window_strides=(2, 2), padding='VALID',
        dimension_numbers=('NCHW', 'OIHW', 'NCHW'))
    conv = conv + conv_b.reshape(1, 8, 1, 1)
    h = jnp.maximum(conv, 0.0).reshape(x.shape[0], -1)      # (B, 72)
    feat = jnp.concatenate([h, c], axis=1)                  # (B, 73)
    enc = jnp.maximum(feat @ enc_w.T + enc_b, 0.0)          # (B, 16)
    return jnp.concatenate([enc, c], axis=1)                # (B, 17)


if __name__ == "__main__":
    # Deterministic synthetic parameters (shapes from the module's __init__).
    pkey = jax.random.PRNGKey(42)
    k1, k2, k3, k4 = jax.random.split(pkey, 4)
    conv_w = jax.random.normal(k1, (8, 1, 3, 3), jnp.float32) * 0.3
    conv_b = jax.random.normal(k2, (8,), jnp.float32) * 0.1
    enc_w = jax.random.normal(k3, (16, 73), jnp.float32) * 0.1
    enc_b = jax.random.normal(k4, (16,), jnp.float32) * 0.1
    # TODO(synk): linear_enc / linear_mean / linear_sig exist in __init__ but
    # are never used in forward(), so they are intentionally not implemented.

    folded = build_folded_params(conv_w, conv_b, enc_w, enc_b)

    # Small deterministic input: B=2 events, 48 trigger-cell features each.
    x = jax.random.uniform(jax.random.PRNGKey(0), (2, 48), jnp.float32)
    out = jax.block_until_ready(cae_encoder_forward(x, folded))
    ref = jax.block_until_ready(reference_forward(x, conv_w, conv_b, enc_w, enc_b))
    assert out.shape == (2, 17), out.shape
    np.testing.assert_allclose(np.asarray(out), np.asarray(ref),
                               rtol=1e-5, atol=1e-5)

    # Multi-step grid with a ragged last tile, default tile selection
    # (B=300 -> TB=256, 2 grid steps, last step partially masked).
    x2 = jax.random.normal(jax.random.PRNGKey(1), (300, 48), jnp.float32)
    out2 = jax.block_until_ready(cae_encoder_forward(x2, folded))
    ref2 = jax.block_until_ready(reference_forward(x2, conv_w, conv_b, enc_w, enc_b))
    np.testing.assert_allclose(np.asarray(out2), np.asarray(ref2),
                               rtol=1e-5, atol=1e-5)

    # Same data, forced small tile (TB=128, 3 grid steps, ragged last tile),
    # and the batch-on-lanes entry point.
    out3 = jax.block_until_ready(cae_encoder_forward_lanes(x2, folded, tb=128))
    np.testing.assert_allclose(np.asarray(out3.T), np.asarray(ref2),
                               rtol=1e-5, atol=1e-5)

    print("KERNEL_OK")
</pallas_src>

<mosaic_0001>
module attributes {stable_mosaic.version = 11 : i64} {
  func.func @encoder_kernel(%arg0: i32, %arg1: memref<128x48xf32, #tpu.memory_space<vmem>>, %arg2: memref<80x48xf32, #tpu.memory_space<vmem>>, %arg3: memref<80x1xf32, #tpu.memory_space<vmem>>, %arg4: memref<80x1xf32, #tpu.memory_space<vmem>>, %arg5: memref<16x80xf32, #tpu.memory_space<vmem>>, %arg6: memref<16x1xf32, #tpu.memory_space<vmem>>, %arg7: memref<17x128xf32, #tpu.memory_space<vmem>>) attributes {dimension_semantics = [#tpu.dimension_semantics<parallel>], iteration_bounds = array<i64: 1>, scalar_prefetch = 0 : i64, scratch_operands = 0 : i64, tpu.core_type = #tpu.core_type<tc>, window_params = [{transform_indices = @transform_0, window_bounds = array<i64: 128, 48>}, {pipeline_mode = #tpu.pipeline_mode<synchronous>, transform_indices = @transform_1, window_bounds = array<i64: 80, 48>}, {pipeline_mode = #tpu.pipeline_mode<synchronous>, transform_indices = @transform_2, window_bounds = array<i64: 80, 1>}, {pipeline_mode = #tpu.pipeline_mode<synchronous>, transform_indices = @transform_3, window_bounds = array<i64: 80, 1>}, {pipeline_mode = #tpu.pipeline_mode<synchronous>, transform_indices = @transform_4, window_bounds = array<i64: 16, 80>}, {pipeline_mode = #tpu.pipeline_mode<synchronous>, transform_indices = @transform_5, window_bounds = array<i64: 16, 1>}, {transform_indices = @transform_6, window_bounds = array<i64: 17, 128>}]} {
    %c0 = arith.constant 0 : index
    %c0_0 = arith.constant 0 : index
    %0 = vector.load %arg1[%c0, %c0_0] : memref<128x48xf32, #tpu.memory_space<vmem>>, vector<128x48xf32>
    %c0_1 = arith.constant 0 : index
    %c0_2 = arith.constant 0 : index
    %1 = vector.load %arg2[%c0_1, %c0_2] : memref<80x48xf32, #tpu.memory_space<vmem>>, vector<80x48xf32>
    %cst = arith.constant dense<0.000000e+00> : vector<80x128xf32>
    %2 = tpu.matmul %1, %0, %cst {dimension_numbers = #tpu.dot_dimension_numbers<[1], [1], [0], [0], [0, 0, 1, 0], [], []>} : vector<80x48xf32>, vector<128x48xf32>, vector<80x128xf32> -> vector<80x128xf32>
    %c0_3 = arith.constant 0 : index
    %c0_4 = arith.constant 0 : index
    %3 = vector.load %arg3[%c0_3, %c0_4] : memref<80x1xf32, #tpu.memory_space<vmem>>, vector<80x1xf32>
    %4 = vector.broadcast %3 : vector<80x1xf32> to vector<80x128xf32>
    %5 = arith.addf %2, %4 : vector<80x128xf32>
    %c0_5 = arith.constant 0 : index
    %c0_6 = arith.constant 0 : index
    %6 = vector.load %arg4[%c0_5, %c0_6] : memref<80x1xf32, #tpu.memory_space<vmem>>, vector<80x1xf32>
    %7 = vector.broadcast %6 : vector<80x1xf32> to vector<80x128xf32>
    %8 = arith.maximumf %5, %7 : vector<80x128xf32>
    %c0_7 = arith.constant 0 : index
    %c0_8 = arith.constant 0 : index
    %9 = vector.load %arg5[%c0_7, %c0_8] : memref<16x80xf32, #tpu.memory_space<vmem>>, vector<16x80xf32>
    %cst_9 = arith.constant dense<0.000000e+00> : vector<16x128xf32>
    %10 = tpu.matmul %9, %8, %cst_9 {dimension_numbers = #tpu.dot_dimension_numbers<[1], [0], [0], [1], [0, 0, 1, 1], [], []>} : vector<16x80xf32>, vector<80x128xf32>, vector<16x128xf32> -> vector<16x128xf32>
    %c0_10 = arith.constant 0 : index
    %c0_11 = arith.constant 0 : index
    %11 = vector.load %arg6[%c0_10, %c0_11] : memref<16x1xf32, #tpu.memory_space<vmem>>, vector<16x1xf32>
    %12 = vector.broadcast %11 : vector<16x1xf32> to vector<16x128xf32>
    %13 = arith.addf %10, %12 : vector<16x128xf32>
    %cst_12 = arith.constant 0.000000e+00 : f32
    %14 = vector.broadcast %cst_12 : f32 to vector<16x128xf32>
    %15 = arith.maximumf %13, %14 : vector<16x128xf32>
    %c0_13 = arith.constant 0 : index
    %c0_14 = arith.constant 0 : index
    %16 = vector.load %arg7[%c0_13, %c0_14] : memref<17x128xf32, #tpu.memory_space<vmem>>, vector<16x128xf32>
    tpu.vector_store %arg7[%c0_13, %c0_14], %15 {strides = array<i32>} : memref<17x128xf32, #tpu.memory_space<vmem>>, vector<16x128xf32>,
    %17 = vector.extract_strided_slice %8 {offsets = [72, 0], sizes = [1, 128], strides = [1, 1]} : vector<80x128xf32> to vector<1x128xf32>
    %c16 = arith.constant 16 : index
    %c0_15 = arith.constant 0 : index
    %18 = vector.load %arg7[%c16, %c0_15] : memref<17x128xf32, #tpu.memory_space<vmem>>, vector<1x128xf32>
    tpu.vector_store %arg7[%c16, %c0_15], %17 {strides = array<i32>} : memref<17x128xf32, #tpu.memory_space<vmem>>, vector<1x128xf32>,
    return
  }
  func.func @transform_0(%arg0: i32) -> (i32, i32) {
    %c0_i32 = arith.constant 0 : i32
    %c0_i32_0 = arith.constant 0 : i32
    return %arg0, %c0_i32 : i32, i32
  }
  func.func @transform_1(%arg0: i32) -> (i32, i32) {
    %c0_i32 = arith.constant 0 : i32
    %c0_i32_0 = arith.constant 0 : i32
    %c0_i32_1 = arith.constant 0 : i32
    return %c0_i32, %c0_i32_0 : i32, i32
  }
  func.func @transform_2(%arg0: i32) -> (i32, i32) {
    %c0_i32 = arith.constant 0 : i32
    %c0_i32_0 = arith.constant 0 : i32
    %c0_i32_1 = arith.constant 0 : i32
    return %c0_i32, %c0_i32_0 : i32, i32
  }
  func.func @transform_3(%arg0: i32) -> (i32, i32) {
    %c0_i32 = arith.constant 0 : i32
    %c0_i32_0 = arith.constant 0 : i32
    %c0_i32_1 = arith.constant 0 : i32
    return %c0_i32, %c0_i32_0 : i32, i32
  }
  func.func @transform_4(%arg0: i32) -> (i32, i32) {
    %c0_i32 = arith.constant 0 : i32
    %c0_i32_0 = arith.constant 0 : i32
    %c0_i32_1 = arith.constant 0 : i32
    return %c0_i32, %c0_i32_0 : i32, i32
  }
  func.func @transform_5(%arg0: i32) -> (i32, i32) {
    %c0_i32 = arith.constant 0 : i32
    %c0_i32_0 = arith.constant 0 : i32
    %c0_i32_1 = arith.constant 0 : i32
    return %c0_i32, %c0_i32_0 : i32, i32
  }
  func.func @transform_6(%arg0: i32) -> (i32, i32) {
    %c0_i32 = arith.constant 0 : i32
    %c0_i32_0 = arith.constant 0 : i32
    return %c0_i32, %arg0 : i32, i32
  }
}

</mosaic_0001>

<llo_original>
// kernel: tpu_custom_call.1
$region0: #{tpu_custom_call.1}
  #allocation0 [shape = 'u32[]', space=smem, size = 0x4, offset = 0x4, fixed_abs, tag = 'smem constant byte address 0x4 - core index']
  #allocation1 [shape = 'u32[72,128]{1,0:T(1,128)}', space=vmem, size = 0x9000, scoped, tag = 'internal scratch']
  %s0 = inlined_call_operand.vmem [shape: f32[2,48], index: 0, kind: input, shape index: {}]
  %s1 = inlined_call_operand.vmem [shape: f32[80,48], index: 1, kind: input, shape index: {}]
  %s2 = inlined_call_operand.vmem [shape: f32[80,1], index: 2, kind: input, shape index: {}]
  %s3 = inlined_call_operand.vmem [shape: f32[80,1], index: 3, kind: input, shape index: {}]
  %s4 = inlined_call_operand.vmem [shape: f32[16,80], index: 4, kind: input, shape index: {}]
  %s5 = inlined_call_operand.vmem [shape: f32[16,1], index: 5, kind: input, shape index: {}]
  %s6 = inlined_call_operand.vmem [shape: f32[17,2], index: 6, kind: output, shape index: {}]
  %s7 = sld [smem:[#allocation0]]
  $region34: #{tpu_custom_call.1} parent=0
    _
  %s9 = ssub.s32 1, %s7
  %s10 = scalar_select 0, %s9, %s7
  // Predicated region
  $region2: #{tpu_custom_call.1} parent=0 // pred_check
    _
  $region3: #{tpu_custom_call.1} parent=0 // pred_check_branch
    %12 = sbr.rel (0) target = $region5
  $region4: #{tpu_custom_call.1} parent=0 // pred_region
    _
  $region5: #{tpu_custom_call.1} parent=0 // pred_fallthru
    _
  // Predicated region
  $region6: #{tpu_custom_call.1} parent=0 // pred_check
    _
  $region7: #{tpu_custom_call.1} parent=0 // pred_check_branch
    %14 = sbr.rel (0) target = $region9
  $region8: #{tpu_custom_call.1} parent=0 // pred_region
    _
  $region9: #{tpu_custom_call.1} parent=0 // pred_fallthru
    _
  // Predicated region
  $region10: #{tpu_custom_call.1} parent=0 // pred_check
    _
  $region11: #{tpu_custom_call.1} parent=0 // pred_check_branch
    %16 = sbr.rel (0) target = $region13
  $region12: #{tpu_custom_call.1} parent=0 // pred_region
    _
  $region13: #{tpu_custom_call.1} parent=0 // pred_fallthru
    _
  // Predicated region
  $region14: #{tpu_custom_call.1} parent=0 // pred_check
    _
  $region15: #{tpu_custom_call.1} parent=0 // pred_check_branch
    %18 = sbr.rel (0) target = $region17
  $region16: #{tpu_custom_call.1} parent=0 // pred_region
    _
  $region17: #{tpu_custom_call.1} parent=0 // pred_fallthru
    _
  // Predicated region
  $region18: #{tpu_custom_call.1} parent=0 // pred_check
    _
  $region19: #{tpu_custom_call.1} parent=0 // pred_check_branch
    %20 = sbr.rel (0) target = $region21
  $region20: #{tpu_custom_call.1} parent=0 // pred_region
    _
  $region21: #{tpu_custom_call.1} parent=0 // pred_fallthru
    _
  // Predicated region
  $region22: #{tpu_custom_call.1} parent=0 // pred_check
    _
  $region23: #{tpu_custom_call.1} parent=0 // pred_check_branch
    %22 = sbr.rel (0) target = $region25
  $region24: #{tpu_custom_call.1} parent=0 // pred_region
    _
  $region25: #{tpu_custom_call.1} parent=0 // pred_fallthru
    _
  %v23 = vld [vmem:[%s0] sm:$0xff]
  %v24 = vld [vmem:[%s0 + $0x8] sm:$0xff]
  %v25 = vld [vmem:[%s0 + $0x10] sm:$0xff]
  %v26 = vld [vmem:[%s0 + $0x18] sm:$0xff]
  %v27 = vld [vmem:[%s0 + $0x20] sm:$0xff]
  %v28 = vld [vmem:[%s0 + $0x28] sm:$0xff]
  %v29 = vld [vmem:[%s0 + $0x30] sm:$0xff]
  %v30 = vld [vmem:[%s0 + $0x38] sm:$0xff]
  %v31 = vld [vmem:[%s0 + $0x40] sm:$0xff]
  %v32 = vld [vmem:[%s0 + $0x48] sm:$0xff]
  %v33 = vld [vmem:[%s0 + $0x50] sm:$0xff]
  %v34 = vld [vmem:[%s0 + $0x58] sm:$0xff]
  %v35 = vld [vmem:[%s0 + $0x60] sm:$0xff]
  %v36 = vld [vmem:[%s0 + $0x68] sm:$0xff]
  %v37 = vld [vmem:[%s0 + $0x70] sm:$0xff]
  %v38 = vld [vmem:[%s0 + $0x78] sm:$0xff]
  %v39 = vld [vmem:[%s1] sm:$0xff]
  %v40 = vld [vmem:[%s1 + $0x8] sm:$0xff]
  %v41 = vld [vmem:[%s1 + $0x10] sm:$0xff]
  %v42 = vld [vmem:[%s1 + $0x18] sm:$0xff]
  %v43 = vld [vmem:[%s1 + $0x20] sm:$0xff]
  %v44 = vld [vmem:[%s1 + $0x28] sm:$0xff]
  %v45 = vld [vmem:[%s1 + $0x30] sm:$0xff]
  %v46 = vld [vmem:[%s1 + $0x38] sm:$0xff]
  %v47 = vld [vmem:[%s1 + $0x40] sm:$0xff]
  %v48 = vld [vmem:[%s1 + $0x48] sm:$0xff]
  %v49 = vld [vmem:[%s2] sm:$0xff]
  %v50 = vld [vmem:[%s2 + $0x8] sm:$0xff]
  %v51 = vld [vmem:[%s2 + $0x10] sm:$0xff]
  %v52 = vld [vmem:[%s2 + $0x18] sm:$0xff]
  %v53 = vld [vmem:[%s2 + $0x20] sm:$0xff]
  %v54 = vld [vmem:[%s2 + $0x28] sm:$0xff]
  %v55 = vld [vmem:[%s2 + $0x30] sm:$0xff]
  %v56 = vld [vmem:[%s2 + $0x38] sm:$0xff]
  %v57 = vld [vmem:[%s2 + $0x40] sm:$0xff]
  %v58 = vld [vmem:[%s2 + $0x48] sm:$0xff]
  %60 = vset.pattern.permute.xlu0 0
  %61 = vperm.xlu0 %60, %v49
  %v62 = vpop.permute.xlu0 %61
  %65 = vset.pattern.permute.xlu0 0
  %66 = vperm.xlu0 %65, %v50
  %v67 = vpop.permute.xlu0 %66
  %70 = vset.pattern.permute.xlu0 0
  %71 = vperm.xlu0 %70, %v51
  %v72 = vpop.permute.xlu0 %71
  %75 = vset.pattern.permute.xlu0 0
  %76 = vperm.xlu0 %75, %v52
  %v77 = vpop.permute.xlu0 %76
  %80 = vset.pattern.permute.xlu0 0
  %81 = vperm.xlu0 %80, %v53
  %v82 = vpop.permute.xlu0 %81
  %85 = vset.pattern.permute.xlu0 0
  %86 = vperm.xlu0 %85, %v54
  %v87 = vpop.permute.xlu0 %86
  %90 = vset.pattern.permute.xlu0 0
  %91 = vperm.xlu0 %90, %v55
  %v92 = vpop.permute.xlu0 %91
  %95 = vset.pattern.permute.xlu0 0
  %96 = vperm.xlu0 %95, %v56
  %v97 = vpop.permute.xlu0 %96
  %100 = vset.pattern.permute.xlu0 0
  %101 = vperm.xlu0 %100, %v57
  %v102 = vpop.permute.xlu0 %101
  %105 = vset.pattern.permute.xlu0 0
  %106 = vperm.xlu0 %105, %v58
  %v107 = vpop.permute.xlu0 %106
  %vm109 = vcmask 392192
  %v111 = vsel %vm109, %v39, 0
  %v114 = vsel %vm109, %v40, 0
  %v117 = vsel %vm109, %v41, 0
  %v120 = vsel %vm109, %v42, 0
  %v123 = vsel %vm109, %v43, 0
  %v126 = vsel %vm109, %v44, 0
  %v129 = vsel %vm109, %v45, 0
  %v132 = vsel %vm109, %v46, 0
  %v135 = vsel %vm109, %v47, 0
  %v138 = vsel %vm109, %v48, 0
  %v141 = vsel %vm109, %v23, 0
  %v144 = vsel %vm109, %v24, 0
  %v147 = vsel %vm109, %v25, 0
  %v150 = vsel %vm109, %v26, 0
  %v153 = vsel %vm109, %v27, 0
  %v156 = vsel %vm109, %v28, 0
  %v159 = vsel %vm109, %v29, 0
  %v162 = vsel %vm109, %v30, 0
  %v165 = vsel %vm109, %v31, 0
  %v168 = vsel %vm109, %v32, 0
  %v171 = vsel %vm109, %v33, 0
  %v174 = vsel %vm109, %v34, 0
  %v177 = vsel %vm109, %v35, 0
  %v180 = vsel %vm109, %v36, 0
  %v183 = vsel %vm109, %v37, 0
  %v186 = vsel %vm109, %v38, 0
  %188 = vmatpush.xpose.msra.mxu0 %v186
  %189 = vmatpush.xpose.msra.mxu0 %v183
  %190 = vmatpush.xpose.msra.mxu0 %v180
  %191 = vmatpush.xpose.msra.mxu0 %v177
  %192 = vmatpush.xpose.msra.mxu0 %v174
  %193 = vmatpush.xpose.msra.mxu0 %v171
  %194 = vmatpush.xpose.msra.mxu0 %v168
  %195 = vmatpush.xpose.msra.mxu0 %v165
  %196 = vmatpush.xpose.msra.mxu0 %v162
  %197 = vmatpush.xpose.msra.mxu0 %v159
  %198 = vmatpush.xpose.msra.mxu0 %v156
  %199 = vmatpush.xpose.msra.mxu0 %v153
  %200 = vmatpush.xpose.msra.mxu0 %v150
  %201 = vmatpush.xpose.msra.mxu0 %v147
  %202 = vmatpush.xpose.msra.mxu0 %v144
  %203 = vmatpush.xpose.msra.mxu0 %v141
  %204 = vmatmul.f32.gmra.mxu0 %v111
  %v205 = vpop.f32.mrf.mxu0
  %v206 = vadd.f32 %v62, %v205
  %207 = vmatmul.f32.gmra.mxu0 %v114
  %v208 = vpop.f32.mrf.mxu0
  %v209 = vadd.f32 %v67, %v208
  %210 = vmatmul.f32.gmra.mxu0 %v117
  %v211 = vpop.f32.mrf.mxu0
  %v212 = vadd.f32 %v72, %v211
  %213 = vmatmul.f32.gmra.mxu0 %v120
  %v214 = vpop.f32.mrf.mxu0
  %v215 = vadd.f32 %v77, %v214
  %216 = vmatmul.f32.gmra.mxu0 %v123
  %v217 = vpop.f32.mrf.mxu0
  %v218 = vadd.f32 %v82, %v217
  %219 = vmatmul.f32.gmra.mxu0 %v126
  %v220 = vpop.f32.mrf.mxu0
  %v221 = vadd.f32 %v87, %v220
  %222 = vmatmul.f32.gmra.mxu0 %v129
  %v223 = vpop.f32.mrf.mxu0
  %v224 = vadd.f32 %v92, %v223
  %225 = vmatmul.f32.gmra.mxu0 %v132
  %v226 = vpop.f32.mrf.mxu0
  %v227 = vadd.f32 %v97, %v226
  %228 = vmatmul.f32.gmra.mxu0 %v135
  %v229 = vpop.f32.mrf.mxu0
  %v230 = vadd.f32 %v102, %v229
  %231 = vmatmul.f32.gmra.mxu0 %v138
  %v232 = vpop.f32.mrf.mxu0
  %v233 = vadd.f32 %v107, %v232
  %234 = vdwg.mxu0
  %v235 = vld [vmem:[%s3] sm:$0xff]
  %v236 = vld [vmem:[%s3 + $0x8] sm:$0xff]
  %v237 = vld [vmem:[%s3 + $0x10] sm:$0xff]
  %v238 = vld [vmem:[%s3 + $0x18] sm:$0xff]
  %v239 = vld [vmem:[%s3 + $0x20] sm:$0xff]
  %v240 = vld [vmem:[%s3 + $0x28] sm:$0xff]
  %v241 = vld [vmem:[%s3 + $0x30] sm:$0xff]
  %v242 = vld [vmem:[%s3 + $0x38] sm:$0xff]
  %v243 = vld [vmem:[%s3 + $0x40] sm:$0xff]
  %v244 = vld [vmem:[%s3 + $0x48] sm:$0xff]
  %246 = vset.pattern.permute.xlu0 0
  %247 = vperm.xlu0 %246, %v235
  %v248 = vpop.permute.xlu0 %247
  %251 = vset.pattern.permute.xlu0 0
  %252 = vperm.xlu0 %251, %v236
  %v253 = vpop.permute.xlu0 %252
  %256 = vset.pattern.permute.xlu0 0
  %257 = vperm.xlu0 %256, %v237
  %v258 = vpop.permute.xlu0 %257
  %261 = vset.pattern.permute.xlu0 0
  %262 = vperm.xlu0 %261, %v238
  %v263 = vpop.permute.xlu0 %262
  %266 = vset.pattern.permute.xlu0 0
  %267 = vperm.xlu0 %266, %v239
  %v268 = vpop.permute.xlu0 %267
  %271 = vset.pattern.permute.xlu0 0
  %272 = vperm.xlu0 %271, %v240
  %v273 = vpop.permute.xlu0 %272
  %276 = vset.pattern.permute.xlu0 0
  %277 = vperm.xlu0 %276, %v241
  %v278 = vpop.permute.xlu0 %277
  %281 = vset.pattern.permute.xlu0 0
  %282 = vperm.xlu0 %281, %v242
  %v283 = vpop.permute.xlu0 %282
  %286 = vset.pattern.permute.xlu0 0
  %287 = vperm.xlu0 %286, %v243
  %v288 = vpop.permute.xlu0 %287
  %291 = vset.pattern.permute.xlu0 0
  %292 = vperm.xlu0 %291, %v244
  %v293 = vpop.permute.xlu0 %292
  %v295 = vmax.f32 %v206, %v248
  %v296 = vmax.f32 %v209, %v253
  %v297 = vmax.f32 %v212, %v258
  %v298 = vmax.f32 %v215, %v263
  %v299 = vmax.f32 %v218, %v268
  %v300 = vmax.f32 %v221, %v273
  %v301 = vmax.f32 %v224, %v278
  %v302 = vmax.f32 %v227, %v283
  %v303 = vmax.f32 %v230, %v288
  %v304 = vmax.f32 %v233, %v293
  %v305 = vld [vmem:[%s4] sm:$0xff]
  %v306 = vld [vmem:[%s4 + $0x8] sm:$0xff]
  %v307 = vld [vmem:[%s5] sm:$0xff]
  %v308 = vld [vmem:[%s5 + $0x8] sm:$0xff]
  %310 = vset.pattern.permute.xlu0 0
  %311 = vperm.xlu0 %310, %v307
  %v312 = vpop.permute.xlu0 %311
  %315 = vset.pattern.permute.xlu0 0
  %316 = vperm.xlu0 %315, %v308
  %v317 = vpop.permute.xlu0 %316
  %vm319 = vcmask 654336
  %v321 = vsel %vm319, %v305, 0
  %v324 = vsel %vm319, %v306, 0
  %326 = vmatpush.msra.mxu0 0.0
  %327 = vmatpush.msra.mxu0 0.0
  %328 = vmatpush.msra.mxu0 0.0
  %329 = vmatpush.msra.mxu0 0.0
  %330 = vmatpush.msra.mxu0 0.0
  %331 = vmatpush.msra.mxu0 0.0
  %332 = vmatpush.msra.mxu0 %v304
  %333 = vmatpush.msra.mxu0 %v303
  %334 = vmatpush.msra.mxu0 %v302
  %335 = vmatpush.msra.mxu0 %v301
  %336 = vmatpush.msra.mxu0 %v300
  %337 = vmatpush.msra.mxu0 %v299
  %338 = vmatpush.msra.mxu0 %v298
  %339 = vmatpush.msra.mxu0 %v297
  %340 = vmatpush.msra.mxu0 %v296
  %341 = vmatpush.msra.mxu0 %v295
  %342 = vmatmul.f32.gmra.mxu0 %v321
  %v343 = vpop.f32.mrf.mxu0
  %v344 = vadd.f32 %v312, %v343
  %345 = vmatmul.f32.gmra.mxu0 %v324
  %v346 = vpop.f32.mrf.mxu0
  %v347 = vadd.f32 %v317, %v346
  %348 = vdwg.mxu0
  %v349 = vmax.f32 %v344, 0.0
  %v350 = vmax.f32 %v347, 0.0
  %351 = vst [vmem:[%s6] sm:$0xff] %v349
  %352 = vst [vmem:[%s6 + $0x8] sm:$0xff] %v350
  %353 = vst [vmem:[%s6 + $0x10] sm:$0x1] %v304
  // Predicated region
  $region26: #{tpu_custom_call.1} parent=0 // pred_check
    _
  $region27: #{tpu_custom_call.1} parent=0 // pred_check_branch
    %355 = sbr.rel (0) target = $region29
  $region28: #{tpu_custom_call.1} parent=0 // pred_region
    _
  $region29: #{tpu_custom_call.1} parent=0 // pred_fallthru
    _
  // Predicated region
  $region30: #{tpu_custom_call.1} parent=0 // pred_check
    _
  $region31: #{tpu_custom_call.1} parent=0 // pred_check_branch
    %357 = sbr.rel (0) target = $region33
  $region32: #{tpu_custom_call.1} parent=0 // pred_region
    _
  $region33: #{tpu_custom_call.1} parent=0 // pred_fallthru
    _

</llo_original>
